<compile_context>
chip_gen: v6e
topology: v6e:2x2x1
jax: 0.10.0
libtpu: 0.0.40
codegen_flags: <defaults>
</compile_context>

<pallas_src>
import jax
import jax.numpy as jnp
from jax.experimental import pallas as pl
from jax.experimental.pallas import tpu as pltpu


def _proj_norm_kernel(x_ref, w_ref, b_ref, g_ref, beta_ref, o_ref):
    # x_ref:    (B, E)  full input embeddings, native dtype (f32 or bf16), resident
    # w_ref:    (E, D)  pre-transposed weight slice for this token, native dtype
    # b_ref:    (1, D)  f32 bias slice for this token
    # g_ref:    (1, D)  f32 LayerNorm gamma (resident)
    # beta_ref: (1, D)  f32 LayerNorm beta  (resident)
    # o_ref:    (B, D)  lane-dense output slice for this token
    # Matmul in native dtype, accumulate in f32 on the MXU.
    y = jnp.dot(x_ref[...], w_ref[...], preferred_element_type=jnp.float32)
    y = y + b_ref[...]                                   # (B, D) f32

    # LayerNorm over the last dim; single-pass statistics (one XLU reduce pair).
    d = y.shape[-1]
    inv_d = 1.0 / d
    s = jnp.sum(y, axis=-1, keepdims=True)
    s2 = jnp.sum(y * y, axis=-1, keepdims=True)
    mean = s * inv_d
    var = jnp.maximum(s2 * inv_d - mean * mean, 0.0)
    y_hat = (y - mean) * jax.lax.rsqrt(var + 1e-5)       # eps matches torch default

    o_ref[...] = (y_hat * g_ref[...] + beta_ref[...]).astype(o_ref.dtype)


def image_proj_model(image_embeds, proj_w, proj_b, ln_gamma, ln_beta,
                     *, clip_extra_context_tokens, cross_attention_dim):
    """image_embeds: (B, E); proj_w: (T*D, E) [torch Linear layout]; proj_b: (T*D,);
    ln_gamma/ln_beta: (D,).  Returns (B, T, D)."""
    B, E = image_embeds.shape
    T = clip_extra_context_tokens
    D = cross_attention_dim
    assert proj_w.shape == (T * D, E), "proj_w must be (T*D, E) (torch Linear weight)"
    assert D % 128 == 0, "cross_attention_dim must be a multiple of 128 for lane-dense tiling"

    # One-time (XLA-folded) layout prep: (T*D, E) -> (E, T*D); params to f32.
    w_t = proj_w.T
    b2 = proj_b.reshape(1, T * D).astype(jnp.float32)
    g2 = ln_gamma.reshape(1, D).astype(jnp.float32)
    be2 = ln_beta.reshape(1, D).astype(jnp.float32)

    out_dtype = image_embeds.dtype
    itemsize = jnp.dtype(out_dtype).itemsize
    cost = pl.CostEstimate(
        flops=2 * B * E * T * D,
        transcendentals=B * T,
        bytes_accessed=(T * D * E * jnp.dtype(w_t.dtype).itemsize   # weight stream
                        + B * E * itemsize                          # input (once)
                        + B * T * D * itemsize                      # output
                        + (T * D + 2 * D) * 4),                     # bias/gamma/beta
    )

    out = pl.pallas_call(
        _proj_norm_kernel,
        out_shape=jax.ShapeDtypeStruct((B, T * D), out_dtype),
        grid_spec=pltpu.PrefetchScalarGridSpec(
            num_scalar_prefetch=0,
            grid=(T,),
            in_specs=[
                pl.BlockSpec((B, E), lambda t: (0, 0)),    # x (resident across grid)
                pl.BlockSpec((E, D), lambda t: (0, t)),    # W^T token slice (streamed)
                pl.BlockSpec((1, D), lambda t: (0, t)),    # bias token slice
                pl.BlockSpec((1, D), lambda t: (0, 0)),    # gamma (resident)
                pl.BlockSpec((1, D), lambda t: (0, 0)),    # beta  (resident)
            ],
            out_specs=pl.BlockSpec((B, D), lambda t: (0, t)),
        ),
        compiler_params=pltpu.CompilerParams(
            dimension_semantics=("parallel",)),
        cost_estimate=cost,
    )(image_embeds, w_t, b2, g2, be2)

    # (B, T*D) -> (B, T, D): free reshape, matches PyTorch's reshape(-1, T, D).
    return out.reshape(B, T, D)


def _reference(image_embeds, proj_w, proj_b, ln_gamma, ln_beta, T, D):
    y = image_embeds @ proj_w.T + proj_b
    y = y.reshape(-1, T, D)
    mean = jnp.mean(y, axis=-1, keepdims=True)
    var = jnp.mean(jnp.square(y - mean), axis=-1, keepdims=True)
    return (y - mean) * jax.lax.rsqrt(var + 1e-5) * ln_gamma + ln_beta


if __name__ == "__main__":
    # Small shapes consistent with the module (scaled down from 1024).
    # D and E kept at 128 so all blocks are lane-dense / (8,128)-friendly.
    B = 2        # batch
    E = 128      # clip_embeddings_dim
    D = 128      # cross_attention_dim
    T = 4        # clip_extra_context_tokens

    key = jax.random.PRNGKey(0)
    k_x, k_w, k_b = jax.random.split(key, 3)

    image_embeds = jax.random.normal(k_x, (B, E), dtype=jnp.float32)
    # Deterministic synthetic parameters (shapes from nn.Linear / nn.LayerNorm).
    proj_w = jax.random.normal(k_w, (T * D, E), dtype=jnp.float32) * 0.02
    proj_b = jax.random.normal(k_b, (T * D,), dtype=jnp.float32) * 0.01
    ln_gamma = jnp.ones((D,), dtype=jnp.float32)
    ln_beta = jnp.zeros((D,), dtype=jnp.float32)

    out = image_proj_model(
        image_embeds, proj_w, proj_b, ln_gamma, ln_beta,
        clip_extra_context_tokens=T, cross_attention_dim=D)
    out = jax.block_until_ready(out)

    ref = _reference(image_embeds, proj_w, proj_b, ln_gamma, ln_beta, T, D)
    assert out.shape == (B, T, D)
    assert jnp.allclose(out, ref, atol=1e-4, rtol=1e-4)

    print("KERNEL_OK")
</pallas_src>

<mosaic_0001>
module attributes {stable_mosaic.version = 11 : i64} {
  func.func @_proj_norm_kernel(%arg0: i32, %arg1: memref<2x128xf32, #tpu.memory_space<vmem>>, %arg2: memref<128x128xf32, #tpu.memory_space<vmem>>, %arg3: memref<1x128xf32, #tpu.memory_space<vmem>>, %arg4: memref<1x128xf32, #tpu.memory_space<vmem>>, %arg5: memref<1x128xf32, #tpu.memory_space<vmem>>, %arg6: memref<2x128xf32, #tpu.memory_space<vmem>>) attributes {dimension_semantics = [#tpu.dimension_semantics<parallel>], iteration_bounds = array<i64: 4>, scalar_prefetch = 0 : i64, scratch_operands = 0 : i64, tpu.core_type = #tpu.core_type<tc>, window_params = [{pipeline_mode = #tpu.pipeline_mode<synchronous>, transform_indices = @transform_0, window_bounds = array<i64: 2, 128>}, {transform_indices = @transform_1, window_bounds = array<i64: 128, 128>}, {transform_indices = @transform_2, window_bounds = array<i64: 1, 128>}, {pipeline_mode = #tpu.pipeline_mode<synchronous>, transform_indices = @transform_3, window_bounds = array<i64: 1, 128>}, {pipeline_mode = #tpu.pipeline_mode<synchronous>, transform_indices = @transform_4, window_bounds = array<i64: 1, 128>}, {transform_indices = @transform_5, window_bounds = array<i64: 2, 128>}]} {
    %c0 = arith.constant 0 : index
    %c0_0 = arith.constant 0 : index
    %0 = vector.load %arg1[%c0, %c0_0] : memref<2x128xf32, #tpu.memory_space<vmem>>, vector<2x128xf32>
    %c0_1 = arith.constant 0 : index
    %c0_2 = arith.constant 0 : index
    %1 = vector.load %arg2[%c0_1, %c0_2] : memref<128x128xf32, #tpu.memory_space<vmem>>, vector<128x128xf32>
    %cst = arith.constant dense<0.000000e+00> : vector<2x128xf32>
    %2 = tpu.matmul %0, %1, %cst {dimension_numbers = #tpu.dot_dimension_numbers<[1], [0], [0], [1], [0, 0, 1, 1], [], []>} : vector<2x128xf32>, vector<128x128xf32>, vector<2x128xf32> -> vector<2x128xf32>
    %c0_3 = arith.constant 0 : index
    %c0_4 = arith.constant 0 : index
    %3 = vector.load %arg3[%c0_3, %c0_4] : memref<1x128xf32, #tpu.memory_space<vmem>>, vector<1x128xf32>
    %4 = vector.broadcast %3 : vector<1x128xf32> to vector<2x128xf32>
    %5 = arith.addf %2, %4 : vector<2x128xf32>
    %cst_5 = arith.constant dense<0.000000e+00> : vector<2xf32>
    %6 = vector.multi_reduction <add>, %5, %cst_5 [1] : vector<2x128xf32> to vector<2xf32>
    %7 = vector.shape_cast %6 : vector<2xf32> to vector<2x1xf32>
    %8 = arith.mulf %5, %5 : vector<2x128xf32>
    %cst_6 = arith.constant dense<0.000000e+00> : vector<2xf32>
    %9 = vector.multi_reduction <add>, %8, %cst_6 [1] : vector<2x128xf32> to vector<2xf32>
    %10 = vector.shape_cast %9 : vector<2xf32> to vector<2x1xf32>
    %cst_7 = arith.constant 7.812500e-03 : f32
    %11 = vector.broadcast %cst_7 : f32 to vector<2x1xf32>
    %12 = arith.mulf %7, %11 : vector<2x1xf32>
    %cst_8 = arith.constant 7.812500e-03 : f32
    %13 = vector.broadcast %cst_8 : f32 to vector<2x1xf32>
    %14 = arith.mulf %10, %13 : vector<2x1xf32>
    %15 = arith.mulf %12, %12 : vector<2x1xf32>
    %16 = arith.subf %14, %15 : vector<2x1xf32>
    %cst_9 = arith.constant 0.000000e+00 : f32
    %17 = vector.broadcast %cst_9 : f32 to vector<2x1xf32>
    %18 = arith.maximumf %16, %17 : vector<2x1xf32>
    %19 = vector.broadcast %12 : vector<2x1xf32> to vector<2x128xf32>
    %20 = arith.subf %5, %19 : vector<2x128xf32>
    %cst_10 = arith.constant 9.99999974E-6 : f32
    %21 = vector.broadcast %cst_10 : f32 to vector<2x1xf32>
    %22 = arith.addf %18, %21 : vector<2x1xf32>
    %23 = math.rsqrt %22 : vector<2x1xf32>
    %24 = vector.broadcast %23 : vector<2x1xf32> to vector<2x128xf32>
    %25 = arith.mulf %20, %24 : vector<2x128xf32>
    %c0_11 = arith.constant 0 : index
    %c0_12 = arith.constant 0 : index
    %26 = vector.load %arg4[%c0_11, %c0_12] : memref<1x128xf32, #tpu.memory_space<vmem>>, vector<1x128xf32>
    %27 = vector.broadcast %26 : vector<1x128xf32> to vector<2x128xf32>
    %28 = arith.mulf %25, %27 : vector<2x128xf32>
    %c0_13 = arith.constant 0 : index
    %c0_14 = arith.constant 0 : index
    %29 = vector.load %arg5[%c0_13, %c0_14] : memref<1x128xf32, #tpu.memory_space<vmem>>, vector<1x128xf32>
    %30 = vector.broadcast %29 : vector<1x128xf32> to vector<2x128xf32>
    %31 = arith.addf %28, %30 : vector<2x128xf32>
    %c0_15 = arith.constant 0 : index
    %c0_16 = arith.constant 0 : index
    %32 = vector.load %arg6[%c0_15, %c0_16] : memref<2x128xf32, #tpu.memory_space<vmem>>, vector<2x128xf32>
    tpu.vector_store %arg6[%c0_15, %c0_16], %31 {strides = array<i32>} : memref<2x128xf32, #tpu.memory_space<vmem>>, vector<2x128xf32>,
    return
  }
  func.func @transform_0(%arg0: i32) -> (i32, i32) {
    %c0_i32 = arith.constant 0 : i32
    %c0_i32_0 = arith.constant 0 : i32
    %c0_i32_1 = arith.constant 0 : i32
    return %c0_i32, %c0_i32_0 : i32, i32
  }
  func.func @transform_1(%arg0: i32) -> (i32, i32) {
    %c0_i32 = arith.constant 0 : i32
    %c0_i32_0 = arith.constant 0 : i32
    return %c0_i32, %arg0 : i32, i32
  }
  func.func @transform_2(%arg0: i32) -> (i32, i32) {
    %c0_i32 = arith.constant 0 : i32
    %c0_i32_0 = arith.constant 0 : i32
    return %c0_i32, %arg0 : i32, i32
  }
  func.func @transform_3(%arg0: i32) -> (i32, i32) {
    %c0_i32 = arith.constant 0 : i32
    %c0_i32_0 = arith.constant 0 : i32
    %c0_i32_1 = arith.constant 0 : i32
    return %c0_i32, %c0_i32_0 : i32, i32
  }
  func.func @transform_4(%arg0: i32) -> (i32, i32) {
    %c0_i32 = arith.constant 0 : i32
    %c0_i32_0 = arith.constant 0 : i32
    %c0_i32_1 = arith.constant 0 : i32
    return %c0_i32, %c0_i32_0 : i32, i32
  }
  func.func @transform_5(%arg0: i32) -> (i32, i32) {
    %c0_i32 = arith.constant 0 : i32
    %c0_i32_0 = arith.constant 0 : i32
    return %c0_i32, %arg0 : i32, i32
  }
}

</mosaic_0001>

<llo_original>
// kernel: tpu_custom_call.1
$region0: #{tpu_custom_call.1}
  #allocation0 [shape = 'u32[]', space=smem, size = 0x4, offset = 0x4, fixed_abs, tag = 'smem constant byte address 0x4 - core index']
  #allocation1 [shape = 'u32[144,128]{1,0:T(1,128)}', space=vmem, size = 0x12000, scoped, tag = 'internal scratch']
  %s0 = inlined_call_operand.hbm [shape: f32[2,128], index: 0, kind: input, shape index: {}]
  %s1 = inlined_call_operand.hbm [shape: f32[128,512], index: 1, kind: input, shape index: {}]
  %s2 = inlined_call_operand.hbm [shape: f32[1,512], index: 2, kind: input, shape index: {}]
  %s3 = inlined_call_operand.vmem [shape: f32[1,128], index: 3, kind: input, shape index: {}]
  %s4 = inlined_call_operand.vmem [shape: f32[1,128], index: 4, kind: input, shape index: {}]
  %s5 = inlined_call_operand.hbm [shape: f32[2,512], index: 5, kind: output, shape index: {}]
  %s6 = sld [smem:[#allocation0]]
  $region65: #{tpu_custom_call.1} parent=0
    _
  %s8 = ssub.s32 1, %s6
  %s9 = scalar_select 0, %s8, %s6
  $region1: #{tpu_custom_call.1} parent=0
    #allocation2 [shape = 'u8[1024]{0}', space=vmem, size = 0x400, scoped, tag = 'input window, operand 0, single buffered']
    #allocation3 [shape = 's32[2]{0}', space=sflag, size = 0x8, scoped, tag = 'scoped memory for tpu_custom_call.1']
    #allocation4 [shape = 's32[2]{0}', space=sflag, size = 0x8, scoped, tag = 'scoped memory for tpu_custom_call.1']
    #allocation5 [shape = 'u8[131072]{0}', space=vmem, size = 0x20000, scoped, tag = 'input window, operand 1']
    #allocation6 [shape = 's32[2]{0}', space=sflag, size = 0x8, scoped, tag = 'scoped memory for tpu_custom_call.1']
    #allocation7 [shape = 'u8[1024]{0}', space=vmem, size = 0x400, scoped, tag = 'input window, operand 2']
    #allocation8 [shape = 'u8[2048]{0}', space=vmem, size = 0x800, scoped, tag = 'output window, operand 0']
    %10 = vsyncpa [#allocation3], 0
    %11 = vsyncpa [#allocation6], 0
    %s12 = scalar_lea.sflag [#allocation6], 1
    %13 = vsyncpa %s12, 0
    %14 = vsyncpa [#allocation4], 0
    %s15 = scalar_lea.sflag [#allocation4], 1
    %16 = vsyncpa %s15, 0
    loop: start=0, step=1, limit=6
    $region2: #{tpu_custom_call.1} parent=1 // loop_pre_header
      _
    $region3: #{tpu_custom_call.1} parent=1 // loop_header
      %s18 = sphi 0, %s22
      %p19 = scmp.ge.s32.totalorder %s18, 6
      %s26 = sphi 0, %s26
      %s28 = sphi 0, %s26
      %s29 = sphi 0, %s28
      %s43 = sphi 0, %s29
      %s49 = sphi 0, %s51
      %s52 = sphi 0, %s49
      %s53 = sphi 0, %s52
      %s69 = sphi 0, %s53
      %s75 = sphi 0, %s77
      %s78 = sphi 0, %s75
      %s79 = sphi 0, %s78
      %s95 = sphi 0, %s79
      %s99 = sphi 0, %s99
      %s101 = sphi 0, %s99
      %s102 = sphi 0, %s101
      %s116 = sphi 0, %s102
      %s120 = sphi 0, %s120
      %s122 = sphi 0, %s120
      %s123 = sphi 0, %s122
      %s137 = sphi 0, %s123
      %s143 = sphi 0, %s145
      %s146 = sphi 0, %s143
      %s147 = sphi 0, %s146
      %s163 = sphi 0, %s147
    $region4: #{tpu_custom_call.1} parent=1 // loop_header_branch
      %21 = sbr.rel (%p19) target = $region8
    $region5: #{tpu_custom_call.1} parent=1 // loop_body
      %s23 = ssub.s32 %s18, 1
      %s24 = ssub.s32 %s18, 2
      %s25 = sadd.s32 %s18, 1
      %s27 = sadd.s32 %s26, 1
      %p30 = scmp.eq.s32.totalorder %s18, 3
      %p31 = scmp.ne.s32.totalorder %s26, %s28
      %p32 = scmp.eq.s32.totalorder %s18, 0
      %p33 = por %p31, %p32
      %p34 = scmp.ne.s32.totalorder %s26, %s28
      %p35 = scmp.eq.s32.totalorder %s23, 3
      %p36 = por %p34, %p35
      %p37 = scmp.ne.s32.totalorder %s28, %s29
      %p38 = scmp.eq.s32.totalorder %s23, 0
      %p39 = por %p37, %p38
      %p40 = scmp.ne.s32.totalorder %s28, %s29
      %p41 = scmp.eq.s32.totalorder %s24, 3
      %p42 = por %p40, %p41
      %p44 = scmp.ne.s32.totalorder %s29, %s43
      %p45 = scmp.eq.s32.totalorder %s24, 0
      %p46 = por %p44, %p45
      %s47 = ssub.s32 %s18, %s25
      %p48 = scmp.eq.s32.totalorder %s47, 0
      %s50 = sadd.s32 %s49, 1
      %s51 = scalar_select %p48, %s49, %s50
      %p54 = pneg %p48
      %p55 = scmp.eq.s32.totalorder %s18, 3
      %p56 = por %p54, %p55
      %p57 = scmp.ne.s32.totalorder %s49, %s52
      %p58 = scmp.eq.s32.totalorder %s18, 0
      %p59 = por %p57, %p58
      %p60 = scmp.ne.s32.totalorder %s49, %s52
      %p61 = scmp.eq.s32.totalorder %s23, 3
      %p62 = por %p60, %p61
      %p63 = scmp.ne.s32.totalorder %s52, %s53
      %p64 = scmp.eq.s32.totalorder %s23, 0
      %p65 = por %p63, %p64
      %p66 = scmp.ne.s32.totalorder %s52, %s53
      %p67 = scmp.eq.s32.totalorder %s24, 3
      %p68 = por %p66, %p67
      %p70 = scmp.ne.s32.totalorder %s53, %s69
      %p71 = scmp.eq.s32.totalorder %s24, 0
      %p72 = por %p70, %p71
      %s73 = ssub.s32 %s18, %s25
      %p74 = scmp.eq.s32.totalorder %s73, 0
      %s76 = sadd.s32 %s75, 1
      %s77 = scalar_select %p74, %s75, %s76
      %p80 = pneg %p74
      %p81 = scmp.eq.s32.totalorder %s18, 3
      %p82 = por %p80, %p81
      %p83 = scmp.ne.s32.totalorder %s75, %s78
      %p84 = scmp.eq.s32.totalorder %s18, 0
      %p85 = por %p83, %p84
      %p86 = scmp.ne.s32.totalorder %s75, %s78
      %p87 = scmp.eq.s32.totalorder %s23, 3
      %p88 = por %p86, %p87
      %p89 = scmp.ne.s32.totalorder %s78, %s79
      %p90 = scmp.eq.s32.totalorder %s23, 0
      %p91 = por %p89, %p90
      %p92 = scmp.ne.s32.totalorder %s78, %s79
      %p93 = scmp.eq.s32.totalorder %s24, 3
      %p94 = por %p92, %p93
      %p96 = scmp.ne.s32.totalorder %s79, %s95
      %p97 = scmp.eq.s32.totalorder %s24, 0
      %p98 = por %p96, %p97
      %s100 = sadd.s32 %s99, 1
      %p103 = scmp.eq.s32.totalorder %s18, 3
      %p104 = scmp.ne.s32.totalorder %s99, %s101
      %p105 = scmp.eq.s32.totalorder %s18, 0
      %p106 = por %p104, %p105
      %p107 = scmp.ne.s32.totalorder %s99, %s101
      %p108 = scmp.eq.s32.totalorder %s23, 3
      %p109 = por %p107, %p108
      %p110 = scmp.ne.s32.totalorder %s101, %s102
      %p111 = scmp.eq.s32.totalorder %s23, 0
      %p112 = por %p110, %p111
      %p113 = scmp.ne.s32.totalorder %s101, %s102
      %p114 = scmp.eq.s32.totalorder %s24, 3
      %p115 = por %p113, %p114
      %p117 = scmp.ne.s32.totalorder %s102, %s116
      %p118 = scmp.eq.s32.totalorder %s24, 0
      %p119 = por %p117, %p118
      %s121 = sadd.s32 %s120, 1
      %p124 = scmp.eq.s32.totalorder %s18, 3
      %p125 = scmp.ne.s32.totalorder %s120, %s122
      %p126 = scmp.eq.s32.totalorder %s18, 0
      %p127 = por %p125, %p126
      %p128 = scmp.ne.s32.totalorder %s120, %s122
      %p129 = scmp.eq.s32.totalorder %s23, 3
      %p130 = por %p128, %p129
      %p131 = scmp.ne.s32.totalorder %s122, %s123
      %p132 = scmp.eq.s32.totalorder %s23, 0
      %p133 = por %p131, %p132
      %p134 = scmp.ne.s32.totalorder %s122, %s123
      %p135 = scmp.eq.s32.totalorder %s24, 3
      %p136 = por %p134, %p135
      %p138 = scmp.ne.s32.totalorder %s123, %s137
      %p139 = scmp.eq.s32.totalorder %s24, 0
      %p140 = por %p138, %p139
      %s141 = ssub.s32 %s18, %s25
      %p142 = scmp.eq.s32.totalorder %s141, 0
      %s144 = sadd.s32 %s143, 1
      %s145 = scalar_select %p142, %s143, %s144
      %p148 = pneg %p142
      %p149 = scmp.eq.s32.totalorder %s18, 3
      %p150 = por %p148, %p149
      %p151 = scmp.ne.s32.totalorder %s143, %s146
      %p152 = scmp.eq.s32.totalorder %s18, 0
      %p153 = por %p151, %p152
      %p154 = scmp.ne.s32.totalorder %s143, %s146
      %p155 = scmp.eq.s32.totalorder %s23, 3
      %p156 = por %p154, %p155
      %p157 = scmp.ne.s32.totalorder %s146, %s147
      %p158 = scmp.eq.s32.totalorder %s23, 0
      %p159 = por %p157, %p158
      %p160 = scmp.ne.s32.totalorder %s146, %s147
      %p161 = scmp.eq.s32.totalorder %s24, 3
      %p162 = por %p160, %p161
      %p164 = scmp.ne.s32.totalorder %s147, %s163
      %p165 = scmp.eq.s32.totalorder %s24, 0
      %p166 = por %p164, %p165
      %p167 = scmp.le.s32.totalorder 1, %s18
      %p168 = scmp.lt.s32.totalorder %s18, 5
      %p169 = pnand %p167, %p168
      %p170 = pneg %p169
      // Predicated region
      $region9: #{tpu_custom_call.1} parent=5 // pred_check
        _
      $region10: #{tpu_custom_call.1} parent=5 // pred_check_branch
        %172 = sbr.rel (%p169) target = $region12
      $region11: #{tpu_custom_call.1} parent=5 // pred_region
        %s173 = ssub.s32 %s18, 1
        // Predicated region
        $region13: #{tpu_custom_call.1} parent=11 // pred_check
          %p174 = pneg %p39
        $region14: #{tpu_custom_call.1} parent=11 // pred_check_branch
          %176 = sbr.rel (%p174) target = $region16
        $region15: #{tpu_custom_call.1} parent=11 // pred_region
          %s178 = ssub.s32 32, 32
          %179 = vsyncadd [#allocation3], %s178
          %s181 = sshll.u32 [#allocation2], 4
          %s182 = int_to_ptr.vmem [resolvable:$true] %s181
          %184 = dma.hbm_to_vmem [thread:$0]  %s0, 32, %s182, [#allocation3]
        $region16: #{tpu_custom_call.1} parent=11 // pred_fallthru
          _
        // Predicated region
        $region17: #{tpu_custom_call.1} parent=11 // pred_check
          %p185 = pneg %p112
        $region18: #{tpu_custom_call.1} parent=11 // pred_check_branch
          %187 = sbr.rel (%p185) target = $region20
        $region19: #{tpu_custom_call.1} parent=11 // pred_region
          _
        $region20: #{tpu_custom_call.1} parent=11 // pred_fallthru
          _
        // Predicated region
        $region21: #{tpu_custom_call.1} parent=11 // pred_check
          %p188 = pneg %p133
        $region22: #{tpu_custom_call.1} parent=11 // pred_check_branch
          %190 = sbr.rel (%p188) target = $region24
        $region23: #{tpu_custom_call.1} parent=11 // pred_region
          _
        $region24: #{tpu_custom_call.1} parent=11 // pred_fallthru
          _
      $region12: #{tpu_custom_call.1} parent=5 // pred_fallthru
        _
      %p191 = scmp.lt.s32.totalorder %s18, 4
      // Predicated region
      $region25: #{tpu_custom_call.1} parent=5 // pred_check
        %p192 = pneg %p191
      $region26: #{tpu_custom_call.1} parent=5 // pred_check_branch
        %194 = sbr.rel (%p192) target = $region28
      $region27: #{tpu_custom_call.1} parent=5 // pred_region
        // Predicated region
        $region29: #{tpu_custom_call.1} parent=27 // pred_check
          %p195 = pneg %p59
        $region30: #{tpu_custom_call.1} parent=27 // pred_check_branch
          %197 = sbr.rel (%p195) target = $region32
        $region31: #{tpu_custom_call.1} parent=27 // pred_region
          %s198 = sand.u32 %s18, 1
          %s199 = scalar_lea.sflag [#allocation6], %s198
          %s200 = sand.u32 %s49, 1
          %s201 = smul.addr %s200, 128
          %s202 = scalar_lea.vmem [#allocation5], %s201
          %s204 = ssub.s32 2048, 2048
          %205 = vsyncadd %s199, %s204
          %s206 = smul.addr %s18, 128
          %s207 = scalar_lea.hbm %s1, %s206
          %s208 = sshll.u32 %s202, 4
          %s209 = int_to_ptr.vmem [resolvable:$true] %s208
          %214 = dma.hbm_to_vmem [thread:$0]  %s207, 2048, %s209, %s199, 512, 128, 8
        $region32: #{tpu_custom_call.1} parent=27 // pred_fallthru
          _
        // Predicated region
        $region33: #{tpu_custom_call.1} parent=27 // pred_check
          %p215 = pneg %p85
        $region34: #{tpu_custom_call.1} parent=27 // pred_check_branch
          %217 = sbr.rel (%p215) target = $region36
        $region35: #{tpu_custom_call.1} parent=27 // pred_region
          %s218 = sand.u32 %s18, 1
          %s219 = scalar_lea.sflag [#allocation6], %s218
          %s220 = sand.u32 %s75, 1
          %s221 = scalar_lea.vmem [#allocation7], %s220
          %s223 = ssub.s32 16, 16
          %224 = vsyncadd %s219, %s223
          %s225 = smul.addr %s18, 16
          %s226 = scalar_lea.hbm %s2, %s225
          %s228 = sshll.u32 %s221, 4
          %s229 = int_to_ptr.vmem [resolvable:$true] %s228
          %231 = dma.hbm_to_vmem [thread:$0]  %s226, 16, %s229, %s219
        $region36: #{tpu_custom_call.1} parent=27 // pred_fallthru
          _
      $region28: #{tpu_custom_call.1} parent=5 // pred_fallthru
        _
      %p232 = scmp.le.s32.totalorder 1, %s18
      %p233 = scmp.lt.s32.totalorder %s18, 5
      %p234 = pnand %p232, %p233
      %p235 = pneg %p234
      // Predicated region
      $region37: #{tpu_custom_call.1} parent=5 // pred_check
        _
      $region38: #{tpu_custom_call.1} parent=5 // pred_check_branch
        %237 = sbr.rel (%p234) target = $region40
      $region39: #{tpu_custom_call.1} parent=5 // pred_region
        %s238 = ssub.s32 %s18, 1
        // Predicated region
        $region41: #{tpu_custom_call.1} parent=39 // pred_check
          %p239 = pneg %p39
        $region42: #{tpu_custom_call.1} parent=39 // pred_check_branch
          %241 = sbr.rel (%p239) target = $region44
        $region43: #{tpu_custom_call.1} parent=39 // pred_region
          %242 = dma.done [#allocation3], 32
        $region44: #{tpu_custom_call.1} parent=39 // pred_fallthru
          _
        %s243 = sand.u32 %s23, 1
        %s244 = scalar_lea.sflag [#allocation6], %s243
        %s245 = sand.u32 %s52, 1
        %s246 = smul.addr %s245, 128
        %s247 = scalar_lea.vmem [#allocation5], %s246
        // Predicated region
        $region45: #{tpu_custom_call.1} parent=39 // pred_check
          %p248 = pneg %p65
        $region46: #{tpu_custom_call.1} parent=39 // pred_check_branch
          %250 = sbr.rel (%p248) target = $region48
        $region47: #{tpu_custom_call.1} parent=39 // pred_region
          %251 = dma.done %s244, 2048
        $region48: #{tpu_custom_call.1} parent=39 // pred_fallthru
          _
        %s252 = sand.u32 %s23, 1
        %s253 = scalar_lea.sflag [#allocation6], %s252
        %s254 = sand.u32 %s78, 1
        %s255 = scalar_lea.vmem [#allocation7], %s254
        // Predicated region
        $region49: #{tpu_custom_call.1} parent=39 // pred_check
          %p256 = pneg %p91
        $region50: #{tpu_custom_call.1} parent=39 // pred_check_branch
          %258 = sbr.rel (%p256) target = $region52
        $region51: #{tpu_custom_call.1} parent=39 // pred_region
          %259 = dma.done %s253, 16
        $region52: #{tpu_custom_call.1} parent=39 // pred_fallthru
          _
        %p260 = pneg %p39
        %p261 = pneg %p36
        %s262 = sand.u32 %s23, 1
        %s263 = scalar_lea.sflag [#allocation6], %s262
        %s264 = sand.u32 %s52, 1
        %s265 = smul.addr %s264, 128
        %s266 = scalar_lea.vmem [#allocation5], %s265
        %p267 = pneg %p65
        %p268 = pneg %p62
        %s269 = sand.u32 %s23, 1
        %s270 = scalar_lea.sflag [#allocation6], %s269
        %s271 = sand.u32 %s78, 1
        %s272 = scalar_lea.vmem [#allocation7], %s271
        %p273 = pneg %p91
        %p274 = pneg %p88
        %p275 = pneg %p112
        %p276 = pneg %p109
        %p277 = pneg %p133
        %p278 = pneg %p130
        %p279 = pneg %p159
        %p280 = pneg %p156
        %s281 = sand.u32 %s146, 1
        %s282 = scalar_lea.sflag [#allocation4], %s281
        %s283 = sand.u32 %s146, 1
        %s284 = smul.addr %s283, 2
        %s285 = scalar_lea.vmem [#allocation8], %s284
        %v286 = vld [vmem:[#allocation2] sm:$0x3]
        %v287 = vld [vmem:[%s247] sm:$0xff]
        %v288 = vld [vmem:[%s247 + $0x8] sm:$0xff]
        %v289 = vld [vmem:[%s247 + $0x10] sm:$0xff]
        %v290 = vld [vmem:[%s247 + $0x18] sm:$0xff]
        %v291 = vld [vmem:[%s247 + $0x20] sm:$0xff]
        %v292 = vld [vmem:[%s247 + $0x28] sm:$0xff]
        %v293 = vld [vmem:[%s247 + $0x30] sm:$0xff]
        %v294 = vld [vmem:[%s247 + $0x38] sm:$0xff]
        %v295 = vld [vmem:[%s247 + $0x40] sm:$0xff]
        %v296 = vld [vmem:[%s247 + $0x48] sm:$0xff]
        %v297 = vld [vmem:[%s247 + $0x50] sm:$0xff]
        %v298 = vld [vmem:[%s247 + $0x58] sm:$0xff]
        %v299 = vld [vmem:[%s247 + $0x60] sm:$0xff]
        %v300 = vld [vmem:[%s247 + $0x68] sm:$0xff]
        %v301 = vld [vmem:[%s247 + $0x70] sm:$0xff]
        %v302 = vld [vmem:[%s247 + $0x78] sm:$0xff]
        %v303 = vld [vmem:[%s255] sm:$0x1]
        %v305 = vlaneseq
        %v306 = vshrl.u32 %v305, 7
        %v307 = vsub.s32 0, %v306
        %v308 = vrot.slane %v303, %v307
        %310 = vmatprep.subr.mxu0 0.0
        %311 = vmatpush1.msra.mxu0 %v302
        %312 = vmatprep.subr.mxu0 0.0
        %313 = vmatpush1.msra.mxu0 %v301
        %314 = vmatprep.subr.mxu0 0.0
        %315 = vmatpush1.msra.mxu0 %v300
        %316 = vmatprep.subr.mxu0 0.0
        %317 = vmatpush1.msra.mxu0 %v299
        %318 = vmatprep.subr.mxu0 0.0
        %319 = vmatpush1.msra.mxu0 %v298
        %320 = vmatprep.subr.mxu0 0.0
        %321 = vmatpush1.msra.mxu0 %v297
        %322 = vmatprep.subr.mxu0 0.0
        %323 = vmatpush1.msra.mxu0 %v296
        %324 = vmatprep.subr.mxu0 0.0
        %325 = vmatpush1.msra.mxu0 %v295
        %326 = vmatprep.subr.mxu0 0.0
        %327 = vmatpush1.msra.mxu0 %v294
        %328 = vmatprep.subr.mxu0 0.0
        %329 = vmatpush1.msra.mxu0 %v293
        %330 = vmatprep.subr.mxu0 0.0
        %331 = vmatpush1.msra.mxu0 %v292
        %332 = vmatprep.subr.mxu0 0.0
        %333 = vmatpush1.msra.mxu0 %v291
        %334 = vmatprep.subr.mxu0 0.0
        %335 = vmatpush1.msra.mxu0 %v290
        %336 = vmatprep.subr.mxu0 0.0
        %337 = vmatpush1.msra.mxu0 %v289
        %338 = vmatprep.subr.mxu0 0.0
        %339 = vmatpush1.msra.mxu0 %v288
        %340 = vmatprep.subr.mxu0 0.0
        %341 = vmatpush1.msra.mxu0 %v287
        %342 = vmatprep.subr.mxu0 0.0
        %343 = vmatpush2.msra.mxu0 0.0
        %344 = vmatprep.subr.mxu0 0.0
        %345 = vmatpush2.msra.mxu0 0.0
        %346 = vmatprep.subr.mxu0 0.0
        %347 = vmatpush2.msra.mxu0 0.0
        %348 = vmatprep.subr.mxu0 0.0
        %349 = vmatpush2.msra.mxu0 0.0
        %350 = vmatprep.subr.mxu0 0.0
        %351 = vmatpush2.msra.mxu0 0.0
        %352 = vmatprep.subr.mxu0 0.0
        %353 = vmatpush2.msra.mxu0 0.0
        %354 = vmatprep.subr.mxu0 0.0
        %355 = vmatpush2.msra.mxu0 0.0
        %356 = vmatprep.subr.mxu0 0.0
        %357 = vmatpush2.msra.mxu0 0.0
        %358 = vmatprep.subr.mxu0 0.0
        %359 = vmatpush2.msra.mxu0 0.0
        %360 = vmatprep.subr.mxu0 0.0
        %361 = vmatpush2.msra.mxu0 0.0
        %362 = vmatprep.subr.mxu0 0.0
        %363 = vmatpush2.msra.mxu0 0.0
        %364 = vmatprep.subr.mxu0 0.0
        %365 = vmatpush2.msra.mxu0 0.0
        %366 = vmatprep.subr.mxu0 0.0
        %367 = vmatpush2.msra.mxu0 0.0
        %368 = vmatprep.subr.mxu0 0.0
        %369 = vmatpush2.msra.mxu0 0.0
        %370 = vmatprep.subr.mxu0 0.0
        %371 = vmatpush2.msra.mxu0 0.0
        %372 = vmatprep.subr.mxu0 0.0
        %373 = vmatpush2.msra.mxu0 0.0
        %374 = vmatprep.mubr.f32.mxu0 0.0
        %375 = vmatmul.mubr.f32.gmra.mxu0 %v286
        %v376 = vpop.f32.mrf.mxu0
        %v377 = vadd.f32 %v308, %v376
        %v378 = vpop.f32.mrf.mxu0
        %379 = vdwg.mxu0
        %vm380 = vcmask 1041408
        %v381 = vsel %vm380, %v377, 0.0
        %382 = vadd.xlane.f32.xlu0 %v381
        %v383 = vpop.xlane.xlu0 %382
        %v384 = vmul.f32 %v377, %v377
        %v385 = vsel %vm380, %v384, 0.0
        %386 = vadd.xlane.f32.xlu0 %v385
        %v387 = vpop.xlane.xlu0 %386
        %v388 = vmul.f32 %v383, 0.0078125
        %v389 = vmul.f32 %v387, 0.0078125
        %v390 = vmul.f32 %v388, %v388
        %v391 = vsub.f32 %v389, %v390
        %v392 = vmax.f32 %v391, 0.0
        %v393 = vsub.f32 %v377, %v388
        %v394 = vadd.f32 %v392, 1e-05
        %v395 = vrsqrt.pop %v394
        %v396 = vmul.f32 %v393, %v395
        %v397 = vld [vmem:[%s3] sm:$0x1]
        %v399 = vlaneseq
        %v400 = vshrl.u32 %v399, 7
        %v401 = vsub.s32 0, %v400
        %v402 = vrot.slane %v397, %v401
        %v404 = vmul.f32 %v396, %v402
        %v405 = vld [vmem:[%s4] sm:$0x1]
        %v407 = vlaneseq
        %v408 = vshrl.u32 %v407, 7
        %v409 = vsub.s32 0, %v408
        %v410 = vrot.slane %v405, %v409
        %v412 = vadd.f32 %v404, %v410
        %413 = vst [vmem:[%s285] sm:$0x3] %v412
        %s414 = sand.u32 %s146, 1
        %s415 = scalar_lea.sflag [#allocation4], %s414
        %s416 = sand.u32 %s146, 1
        %s417 = smul.addr %s416, 2
        %s418 = scalar_lea.vmem [#allocation8], %s417
        // Predicated region
        $region53: #{tpu_custom_call.1} parent=39 // pred_check
          %p419 = pneg %p156
        $region54: #{tpu_custom_call.1} parent=39 // pred_check_branch
          %421 = sbr.rel (%p419) target = $region56
        $region55: #{tpu_custom_call.1} parent=39 // pred_region
          %s423 = ssub.s32 32, 32
          %424 = vsyncadd %s415, %s423
          %s425 = smul.addr %s23, 32
          %s426 = scalar_lea.hbm %s5, %s425
          %s428 = sshll.u32 %s418, 4
          %s429 = int_to_ptr.vmem [resolvable:$true] %s428
          %431 = dma.vmem_to_hbm [thread:$0]  %s429, 32, %s426, %s415
        $region56: #{tpu_custom_call.1} parent=39 // pred_fallthru
          _
      $region40: #{tpu_custom_call.1} parent=5 // pred_fallthru
        _
      %p432 = scmp.le.s32.totalorder 2, %s18
      // Predicated region
      $region57: #{tpu_custom_call.1} parent=5 // pred_check
        %p433 = pneg %p432
      $region58: #{tpu_custom_call.1} parent=5 // pred_check_branch
        %435 = sbr.rel (%p433) target = $region60
      $region59: #{tpu_custom_call.1} parent=5 // pred_region
        %s436 = ssub.s32 %s18, 2
        // Predicated region
        $region61: #{tpu_custom_call.1} parent=59 // pred_check
          %p437 = pneg %p162
        $region62: #{tpu_custom_call.1} parent=59 // pred_check_branch
          %439 = sbr.rel (%p437) target = $region64
        $region63: #{tpu_custom_call.1} parent=59 // pred_region
          %s440 = sand.u32 %s147, 1
          %s441 = scalar_lea.sflag [#allocation4], %s440
          %s442 = sand.u32 %s147, 1
          %s443 = smul.addr %s442, 2
          %s444 = scalar_lea.vmem [#allocation8], %s443
          %445 = dma.done %s441, 32
        $region64: #{tpu_custom_call.1} parent=59 // pred_fallthru
          _
      $region60: #{tpu_custom_call.1} parent=5 // pred_fallthru
        _
    $region6: #{tpu_custom_call.1} parent=1 // loop_footer
      %s22 = sadd.s32 1, %s18
    $region7: #{tpu_custom_call.1} parent=1 // loop_footer_branch
      %17 = sbr.rel target = $region3
    $region8: #{tpu_custom_call.1} parent=1 // loop_exit
      _
    %446 = vsyncpa [#allocation3], 1
    %s447 = scalar_lea.sflag [#allocation3], 1
    %448 = vsyncpa %s447, 1
    %449 = vsyncpa [#allocation6], 1
    %s450 = scalar_lea.sflag [#allocation6], 1
    %451 = vsyncpa %s450, 1
    %452 = vsyncpa [#allocation4], 1
    %s453 = scalar_lea.sflag [#allocation4], 1
    %454 = vsyncpa %s453, 1

</llo_original>
